<compile_context>
chip_gen: v7x
topology: tpu7x:2x2x1
jax: 0.10.0
libtpu: 0.0.40
codegen_flags: <defaults>
</compile_context>

<pallas_src>
import functools
import math

import numpy as np
import jax
import jax.numpy as jnp
from jax.experimental import pallas as pl
from jax.experimental.pallas import tpu as pltpu

SOBEL_X = ((-1.0, 0.0, 1.0), (-2.0, 0.0, 2.0), (-1.0, 0.0, 1.0))
SOBEL_Y = ((-1.0, -2.0, -1.0), (0.0, 0.0, 0.0), (1.0, 2.0, 1.0))
SMOOTH_TAPS = (1.0, 2.0, 1.0)   # separable smoothing part of sobel
DIFF_TAPS = (-1.0, 0.0, 1.0)    # separable derivative part of sobel


def _round_up(x, m):
    return ((x + m - 1) // m) * m


def _vert_band(n, taps):
    """A such that (A @ x)[i, :] == sum_m taps[m] * x_zeropad[i + m - 1, :]."""
    a = np.zeros((n, n), np.float32)
    for t, d in enumerate((-1, 0, 1)):
        a += np.float32(taps[t]) * np.eye(n, k=d, dtype=np.float32)
    return a


def _horiz_band(n, taps):
    """M such that (x @ M)[:, j] == sum_m taps[m] * x_zeropad[:, j + m - 1]."""
    return _vert_band(n, taps).T.copy()


def _choose_lane_block(W, total_lanes):
    base = W * 128 // math.gcd(W, 128)            # lcm(W, 128): lane-dense & whole planes
    lb = base
    # Grow toward ~512 lanes/block to amortize per-step overhead; the
    # block-diagonal band matrix is lb x lb, so keep it modest (fits easily
    # within v7x's 64 MiB VMEM as well as v5e/v6e's 128 MiB).
    while lb * 2 <= 512 and lb < _round_up(total_lanes, base):
        lb *= 2
    return lb


# ----------------------------- Pallas kernel ------------------------------ #
def _gradient_loss_kernel(p_ref, t_ref, av_ref, mh_dx_ref, mh_sy_ref, out_ref, *, H):
    # p_ref / t_ref: (H, LB) f32 block of lane-packed planes.
    d = p_ref[...] - t_ref[...]                        # f32 (VPU)
    db = d.astype(jnp.bfloat16)

    # Vertical 3-tap passes for BOTH sobel filters in one MXU matmul:
    #   rows [0:H)   -> smoothing taps  (feeds sobel_x)
    #   rows [H:2H)  -> derivative taps (feeds sobel_y)
    v = jnp.dot(av_ref[...], db, preferred_element_type=jnp.float32)   # (2H, LB)

    # Horizontal passes: block-diagonal band matrices (zero padding folded in,
    # no cross-plane leakage across the packed lane axis).
    gx = jnp.dot(v[:H].astype(jnp.bfloat16), mh_dx_ref[...],
                 preferred_element_type=jnp.float32)                   # (H, LB)
    gy = jnp.dot(v[H:].astype(jnp.bfloat16), mh_sy_ref[...],
                 preferred_element_type=jnp.float32)                   # (H, LB)

    g = jnp.abs(gx) + jnp.abs(gy)                                      # f32 (VPU)
    # Per-lane partial sums only; cross-lane reduction is deferred to JAX so
    # the grid axis stays "parallel" (no shared accumulator).
    out_ref[0] = jnp.sum(g, axis=0, keepdims=True)


# ------------------------------- Wrapper ----------------------------------- #
def gradient_loss(pred, target):
    """pred, target: (N, C, H, W) float32 (the module's sobel weight is
    (1,1,3,3), i.e. C == 1).  Returns the scalar GradientLoss."""
    N, C, H, W = pred.shape
    NC = N * C
    total_lanes = NC * W
    lane_block = _choose_lane_block(W, total_lanes)
    padded_lanes = _round_up(total_lanes, lane_block)
    num_blocks = padded_lanes // lane_block
    planes_per_block = lane_block // W

    def pack(x):
        # (N,C,H,W) -> (NC,H,W) -> (H, NC*W) lane-dense, zero-pad to block multiple.
        x = x.reshape(NC, H, W).astype(jnp.float32)
        x = jnp.transpose(x, (1, 0, 2)).reshape(H, total_lanes)
        return jnp.pad(x, ((0, 0), (0, padded_lanes - total_lanes)))

    pp = pack(pred)
    tp = pack(target)

    # Banded matrices (zero padding folded in), bf16 operands for the MXU.
    av = np.concatenate([_vert_band(H, SMOOTH_TAPS),
                         _vert_band(H, DIFF_TAPS)], axis=0)             # (2H, H)
    eye_b = np.eye(planes_per_block, dtype=np.float32)
    mh_dx = np.kron(eye_b, _horiz_band(W, DIFF_TAPS))                   # (LB, LB)
    mh_sy = np.kron(eye_b, _horiz_band(W, SMOOTH_TAPS))                 # (LB, LB)
    av = jnp.asarray(av, jnp.bfloat16)
    mh_dx = jnp.asarray(mh_dx, jnp.bfloat16)
    mh_sy = jnp.asarray(mh_sy, jnp.bfloat16)

    flops = num_blocks * (2 * (2 * H) * H * lane_block
                          + 2 * 2 * H * lane_block * lane_block)
    bytes_accessed = (2 * H * padded_lanes * 4                 # pred/target planes
                      + num_blocks * lane_block * 4            # partial sums
                      + 2 * H * H * 2                          # vertical bands
                      + 2 * lane_block * lane_block * 2)       # horizontal bands

    partials = pl.pallas_call(
        functools.partial(_gradient_loss_kernel, H=H),
        out_shape=jax.ShapeDtypeStruct((num_blocks, 1, lane_block), jnp.float32),
        grid_spec=pltpu.PrefetchScalarGridSpec(
            num_scalar_prefetch=0,
            grid=(num_blocks,),
            in_specs=[
                pl.BlockSpec((H, lane_block), lambda i: (0, i)),        # pred
                pl.BlockSpec((H, lane_block), lambda i: (0, i)),        # target
                pl.BlockSpec((2 * H, H), lambda i: (0, 0)),             # vertical bands
                pl.BlockSpec((lane_block, lane_block), lambda i: (0, 0)),  # horiz diff
                pl.BlockSpec((lane_block, lane_block), lambda i: (0, 0)),  # horiz smooth
            ],
            out_specs=pl.BlockSpec((1, 1, lane_block), lambda i: (i, 0, 0)),
        ),
        compiler_params=pltpu.CompilerParams(
            dimension_semantics=("parallel",),
            vmem_limit_bytes=32 * 1024 * 1024,
        ),
        cost_estimate=pl.CostEstimate(
            flops=flops, transcendentals=0, bytes_accessed=bytes_accessed),
    )(pp, tp, av, mh_dx, mh_sy)

    # Padded lanes contribute exactly zero, so divide by the true element count.
    # l1(gx) + l1(gy) == (sum|gx_d| + sum|gy_d|) / (N*C*H*W).
    return jnp.sum(partials) / jnp.float32(NC * H * W)


# --------------------------- Pure-JAX reference ----------------------------- #
def _reference(pred, target):
    N, C, H, W = pred.shape
    sx = jnp.asarray(SOBEL_X, jnp.float32)
    sy = jnp.asarray(SOBEL_Y, jnp.float32)

    def conv(x, k):
        xp = jnp.pad(x, ((0, 0), (0, 0), (1, 1), (1, 1)))
        out = jnp.zeros_like(x)
        for a in range(3):
            for b in range(3):
                out = out + k[a, b] * xp[:, :, a:a + H, b:b + W]
        return out

    gx = conv(pred, sx) - conv(target, sx)
    gy = conv(pred, sy) - conv(target, sy)
    return jnp.mean(jnp.abs(gx)) + jnp.mean(jnp.abs(gy))


# --------------------------------- main ------------------------------------ #
if __name__ == "__main__":
    key = jax.random.PRNGKey(0)
    k1, k2 = jax.random.split(key)
    # GradientLoss's sobel weight is (1, 1, 3, 3) => single-channel inputs.
    pred = jax.random.uniform(k1, (2, 1, 16, 16), dtype=jnp.float32)
    target = jax.random.uniform(k2, (2, 1, 16, 16), dtype=jnp.float32)

    loss = jax.block_until_ready(jax.jit(gradient_loss)(pred, target))
    ref = jax.block_until_ready(_reference(pred, target))

    assert np.allclose(float(loss), float(ref), rtol=5e-3, atol=1e-4), \
        (float(loss), float(ref))
    print("KERNEL_OK")
</pallas_src>

<mosaic_0001>
module attributes {stable_mosaic.version = 11 : i64} {
  func.func @_gradient_loss_kernel(%arg0: i32, %arg1: memref<16x128xf32, #tpu.memory_space<vmem>>, %arg2: memref<16x128xf32, #tpu.memory_space<vmem>>, %arg3: memref<32x16xbf16, #tpu.memory_space<vmem>>, %arg4: memref<128x128xbf16, #tpu.memory_space<vmem>>, %arg5: memref<128x128xbf16, #tpu.memory_space<vmem>>, %arg6: memref<1x1x128xf32, #tpu.memory_space<vmem>>) attributes {dimension_semantics = [#tpu.dimension_semantics<parallel>], iteration_bounds = array<i64: 1>, scalar_prefetch = 0 : i64, scratch_operands = 0 : i64, tpu.core_type = #tpu.core_type<tc>, window_params = [{transform_indices = @transform_0, window_bounds = array<i64: 16, 128>}, {transform_indices = @transform_1, window_bounds = array<i64: 16, 128>}, {pipeline_mode = #tpu.pipeline_mode<synchronous>, transform_indices = @transform_2, window_bounds = array<i64: 32, 16>}, {pipeline_mode = #tpu.pipeline_mode<synchronous>, transform_indices = @transform_3, window_bounds = array<i64: 128, 128>}, {pipeline_mode = #tpu.pipeline_mode<synchronous>, transform_indices = @transform_4, window_bounds = array<i64: 128, 128>}, {transform_indices = @transform_5, window_bounds = array<i64: 1, 1, 128>}]} {
    %c0 = arith.constant 0 : index
    %c0_0 = arith.constant 0 : index
    %0 = vector.load %arg1[%c0, %c0_0] : memref<16x128xf32, #tpu.memory_space<vmem>>, vector<16x128xf32>
    %c0_1 = arith.constant 0 : index
    %c0_2 = arith.constant 0 : index
    %1 = vector.load %arg2[%c0_1, %c0_2] : memref<16x128xf32, #tpu.memory_space<vmem>>, vector<16x128xf32>
    %2 = arith.subf %0, %1 : vector<16x128xf32>
    %3 = arith.truncf %2 : vector<16x128xf32> to vector<16x128xbf16>
    %c0_3 = arith.constant 0 : index
    %c0_4 = arith.constant 0 : index
    %4 = vector.load %arg3[%c0_3, %c0_4] : memref<32x16xbf16, #tpu.memory_space<vmem>>, vector<32x16xbf16>
    %cst = arith.constant dense<0.000000e+00> : vector<32x128xf32>
    %5 = tpu.matmul %4, %3, %cst {dimension_numbers = #tpu.dot_dimension_numbers<[1], [0], [0], [1], [0, 0, 1, 1], [], []>} : vector<32x16xbf16>, vector<16x128xbf16>, vector<32x128xf32> -> vector<32x128xf32>
    %6 = vector.extract_strided_slice %5 {offsets = [0, 0], sizes = [16, 128], strides = [1, 1]} : vector<32x128xf32> to vector<16x128xf32>
    %7 = arith.truncf %6 : vector<16x128xf32> to vector<16x128xbf16>
    %c0_5 = arith.constant 0 : index
    %c0_6 = arith.constant 0 : index
    %8 = vector.load %arg4[%c0_5, %c0_6] : memref<128x128xbf16, #tpu.memory_space<vmem>>, vector<128x128xbf16>
    %cst_7 = arith.constant dense<0.000000e+00> : vector<16x128xf32>
    %9 = tpu.matmul %7, %8, %cst_7 {dimension_numbers = #tpu.dot_dimension_numbers<[1], [0], [0], [1], [0, 0, 1, 1], [], []>} : vector<16x128xbf16>, vector<128x128xbf16>, vector<16x128xf32> -> vector<16x128xf32>
    %10 = vector.extract_strided_slice %5 {offsets = [16, 0], sizes = [16, 128], strides = [1, 1]} : vector<32x128xf32> to vector<16x128xf32>
    %11 = arith.truncf %10 : vector<16x128xf32> to vector<16x128xbf16>
    %c0_8 = arith.constant 0 : index
    %c0_9 = arith.constant 0 : index
    %12 = vector.load %arg5[%c0_8, %c0_9] : memref<128x128xbf16, #tpu.memory_space<vmem>>, vector<128x128xbf16>
    %cst_10 = arith.constant dense<0.000000e+00> : vector<16x128xf32>
    %13 = tpu.matmul %11, %12, %cst_10 {dimension_numbers = #tpu.dot_dimension_numbers<[1], [0], [0], [1], [0, 0, 1, 1], [], []>} : vector<16x128xbf16>, vector<128x128xbf16>, vector<16x128xf32> -> vector<16x128xf32>
    %14 = math.absf %9 : vector<16x128xf32>
    %15 = math.absf %13 : vector<16x128xf32>
    %16 = arith.addf %14, %15 : vector<16x128xf32>
    %cst_11 = arith.constant dense<0.000000e+00> : vector<128xf32>
    %17 = vector.multi_reduction <add>, %16, %cst_11 [0] : vector<16x128xf32> to vector<128xf32>
    %18 = vector.shape_cast %17 : vector<128xf32> to vector<1x128xf32>
    %c0_12 = arith.constant 0 : index
    %c0_13 = arith.constant 0 : index
    %c0_14 = arith.constant 0 : index
    %19 = vector.load %arg6[%c0_12, %c0_13, %c0_14] : memref<1x1x128xf32, #tpu.memory_space<vmem>>, vector<1x1x128xf32>
    %20 = vector.shape_cast %19 : vector<1x1x128xf32> to vector<1x128xf32>
    %21 = vector.shape_cast %18 : vector<1x128xf32> to vector<1x1x128xf32>
    tpu.vector_store %arg6[%c0_12, %c0_13, %c0_14], %21 {strides = array<i32>} : memref<1x1x128xf32, #tpu.memory_space<vmem>>, vector<1x1x128xf32>,
    return
  }
  func.func @transform_0(%arg0: i32) -> (i32, i32) {
    %c0_i32 = arith.constant 0 : i32
    %c0_i32_0 = arith.constant 0 : i32
    return %c0_i32, %arg0 : i32, i32
  }
  func.func @transform_1(%arg0: i32) -> (i32, i32) {
    %c0_i32 = arith.constant 0 : i32
    %c0_i32_0 = arith.constant 0 : i32
    return %c0_i32, %arg0 : i32, i32
  }
  func.func @transform_2(%arg0: i32) -> (i32, i32) {
    %c0_i32 = arith.constant 0 : i32
    %c0_i32_0 = arith.constant 0 : i32
    %c0_i32_1 = arith.constant 0 : i32
    return %c0_i32, %c0_i32_0 : i32, i32
  }
  func.func @transform_3(%arg0: i32) -> (i32, i32) {
    %c0_i32 = arith.constant 0 : i32
    %c0_i32_0 = arith.constant 0 : i32
    %c0_i32_1 = arith.constant 0 : i32
    return %c0_i32, %c0_i32_0 : i32, i32
  }
  func.func @transform_4(%arg0: i32) -> (i32, i32) {
    %c0_i32 = arith.constant 0 : i32
    %c0_i32_0 = arith.constant 0 : i32
    %c0_i32_1 = arith.constant 0 : i32
    return %c0_i32, %c0_i32_0 : i32, i32
  }
  func.func @transform_5(%arg0: i32) -> (i32, i32, i32) {
    %c0_i32 = arith.constant 0 : i32
    %c0_i32_0 = arith.constant 0 : i32
    %c0_i32_1 = arith.constant 0 : i32
    return %arg0, %c0_i32, %c0_i32_0 : i32, i32, i32
  }
}

</mosaic_0001>

<llo_original>
// kernel: gradient_loss.1
$region0: #{gradient_loss.1}
  #allocation0 [shape = 'u32[]', space=smem, size = 0x4, offset = 0x4, fixed_abs, tag = 'smem constant byte address 0x4 - core index']
  #allocation1 [shape = 'u32[144,128]{1,0:T(1,128)}', space=vmem, size = 0x12000, scoped, tag = 'internal scratch']
  %s0 = inlined_call_operand.vmem [shape: f32[16,128], index: 0, kind: input, shape index: {}]
  %s1 = inlined_call_operand.vmem [shape: f32[16,128], index: 1, kind: input, shape index: {}]
  %s2 = inlined_call_operand.vmem [shape: bf16[32,16], index: 2, kind: input, shape index: {}]
  %s3 = inlined_call_operand.vmem [shape: bf16[128,128], index: 3, kind: input, shape index: {}]
  %s4 = inlined_call_operand.vmem [shape: bf16[128,128], index: 4, kind: input, shape index: {}]
  %s5 = inlined_call_operand.vmem [shape: f32[1,1,128], index: 5, kind: output, shape index: {}]
  %s6 = sld [smem:[#allocation0]]
  $region30: #{gradient_loss.1} parent=0
    _
  %s8 = ssub.s32 1, %s6
  %s9 = scalar_select 0, %s8, %s6
  // Predicated region
  $region2: #{gradient_loss.1} parent=0 // pred_check
    _
  $region3: #{gradient_loss.1} parent=0 // pred_check_branch
    %11 = sbr.rel (0) target = $region5
  $region4: #{gradient_loss.1} parent=0 // pred_region
    _
  $region5: #{gradient_loss.1} parent=0 // pred_fallthru
    _
  // Predicated region
  $region6: #{gradient_loss.1} parent=0 // pred_check
    _
  $region7: #{gradient_loss.1} parent=0 // pred_check_branch
    %13 = sbr.rel (0) target = $region9
  $region8: #{gradient_loss.1} parent=0 // pred_region
    _
  $region9: #{gradient_loss.1} parent=0 // pred_fallthru
    _
  // Predicated region
  $region10: #{gradient_loss.1} parent=0 // pred_check
    _
  $region11: #{gradient_loss.1} parent=0 // pred_check_branch
    %15 = sbr.rel (0) target = $region13
  $region12: #{gradient_loss.1} parent=0 // pred_region
    _
  $region13: #{gradient_loss.1} parent=0 // pred_fallthru
    _
  // Predicated region
  $region14: #{gradient_loss.1} parent=0 // pred_check
    _
  $region15: #{gradient_loss.1} parent=0 // pred_check_branch
    %17 = sbr.rel (0) target = $region17
  $region16: #{gradient_loss.1} parent=0 // pred_region
    _
  $region17: #{gradient_loss.1} parent=0 // pred_fallthru
    _
  // Predicated region
  $region18: #{gradient_loss.1} parent=0 // pred_check
    _
  $region19: #{gradient_loss.1} parent=0 // pred_check_branch
    %19 = sbr.rel (0) target = $region21
  $region20: #{gradient_loss.1} parent=0 // pred_region
    _
  $region21: #{gradient_loss.1} parent=0 // pred_fallthru
    _
  %v21 = vld [vmem:[%s0] sm:$0xff]
  %v22 = vld [vmem:[%s0 + $0x8] sm:$0xff]
  %v23 = vld [vmem:[%s1] sm:$0xff]
  %v24 = vld [vmem:[%s1 + $0x8] sm:$0xff]
  %v25 = vsub.f32 %v21, %v23
  %v26 = vsub.f32 %v22, %v24
  %v27 = vpack.c.bf16 %v26, %v25
  %v28 = vld [vmem:[%s2] sm:$0xf]
  %v29 = vld [vmem:[%s2 + $0x4] sm:$0xf]
  %v30 = vld [vmem:[%s2 + $0x8] sm:$0xf]
  %v31 = vld [vmem:[%s2 + $0xc] sm:$0xf]
  %v36 = vunpack.c.l.b16 %v28
  %v37 = vunpack.c.l.b16 %v29
  %v38 = vunpack.c.l.b16 %v30
  %v39 = vunpack.c.l.b16 %v31
  %v40 = vpack.c.b16 %v37, %v36
  %v41 = vpack.c.b16 %v39, %v38
  %vm42 = vcmask 130048
  %v44 = vsel %vm42, %v40, 0
  %v47 = vsel %vm42, %v41, 0
  %49 = vmatprep.subr.bf16.mxu0 0
  %50 = vmatpush1.bf16.msra.mxu0 %v27
  %51 = vmatprep.subr.bf16.mxu0 0
  %52 = vmatpush1.bf16.msra.mxu0 0
  %53 = vmatprep.subr.bf16.mxu0 0
  %54 = vmatpush1.bf16.msra.mxu0 0
  %55 = vmatprep.subr.bf16.mxu0 0
  %56 = vmatpush1.bf16.msra.mxu0 0
  %57 = vmatprep.subr.bf16.mxu0 0
  %58 = vmatpush1.bf16.msra.mxu0 0
  %59 = vmatprep.subr.bf16.mxu0 0
  %60 = vmatpush1.bf16.msra.mxu0 0
  %61 = vmatprep.subr.bf16.mxu0 0
  %62 = vmatpush1.bf16.msra.mxu0 0
  %63 = vmatprep.subr.bf16.mxu0 0
  %64 = vmatpush1.bf16.msra.mxu0 0
  %65 = vmatprep.subr.bf16.mxu0 0
  %66 = vmatpush1.bf16.msra.mxu0 0
  %67 = vmatprep.subr.bf16.mxu0 0
  %68 = vmatpush1.bf16.msra.mxu0 0
  %69 = vmatprep.subr.bf16.mxu0 0
  %70 = vmatpush1.bf16.msra.mxu0 0
  %71 = vmatprep.subr.bf16.mxu0 0
  %72 = vmatpush1.bf16.msra.mxu0 0
  %73 = vmatprep.subr.bf16.mxu0 0
  %74 = vmatpush1.bf16.msra.mxu0 0
  %75 = vmatprep.subr.bf16.mxu0 0
  %76 = vmatpush1.bf16.msra.mxu0 0
  %77 = vmatprep.subr.bf16.mxu0 0
  %78 = vmatpush1.bf16.msra.mxu0 0
  %79 = vmatprep.subr.bf16.mxu0 0
  %80 = vmatpush1.bf16.msra.mxu0 0
  %81 = vmatprep.mubr.bf16.mxu0 0
  %82 = vmatmul.mubr.bf16.gmra.mrb[0].mxu0 %v44
  %v83 = vpop.f32.mrb[0].mxu0
  %v84 = vadd.f32 0.0, %v83
  %v85 = vpop.f32.mrb[0].mxu0
  %v86 = vpop.f32.mrb[0].mxu0
  %v87 = vadd.f32 0.0, %v86
  %v88 = vpop.f32.mrb[0].mxu0
  %89 = vmatprep.mubr.bf16.mxu0 0
  %90 = vmatmul.mubr.bf16.gmra.mrb[0].mxu0 %v47
  %v91 = vpop.f32.mrb[0].mxu0
  %v92 = vadd.f32 0.0, %v91
  %v93 = vpop.f32.mrb[0].mxu0
  %v94 = vpop.f32.mrb[0].mxu0
  %v95 = vadd.f32 0.0, %v94
  %v96 = vpop.f32.mrb[0].mxu0
  %97 = vdwg.mxu0
  %v98 = vpack.c.bf16 %v87, %v84
  %v99 = vld [vmem:[%s3] sm:$0xf]
  %v100 = vld [vmem:[%s3 + $0x4] sm:$0xf]
  %v101 = vld [vmem:[%s3 + $0x8] sm:$0xf]
  %v102 = vld [vmem:[%s3 + $0xc] sm:$0xf]
  %v103 = vld [vmem:[%s3 + $0x10] sm:$0xf]
  %v104 = vld [vmem:[%s3 + $0x14] sm:$0xf]
  %v105 = vld [vmem:[%s3 + $0x18] sm:$0xf]
  %v106 = vld [vmem:[%s3 + $0x1c] sm:$0xf]
  %v107 = vld [vmem:[%s3 + $0x20] sm:$0xf]
  %v108 = vld [vmem:[%s3 + $0x24] sm:$0xf]
  %v109 = vld [vmem:[%s3 + $0x28] sm:$0xf]
  %v110 = vld [vmem:[%s3 + $0x2c] sm:$0xf]
  %v111 = vld [vmem:[%s3 + $0x30] sm:$0xf]
  %v112 = vld [vmem:[%s3 + $0x34] sm:$0xf]
  %v113 = vld [vmem:[%s3 + $0x38] sm:$0xf]
  %v114 = vld [vmem:[%s3 + $0x3c] sm:$0xf]
  %v131 = vunpack.c.l.b16 %v99
  %v132 = vunpack.c.l.b16 %v100
  %v133 = vunpack.c.l.b16 %v101
  %v134 = vunpack.c.l.b16 %v102
  %v135 = vunpack.c.l.b16 %v103
  %v136 = vunpack.c.l.b16 %v104
  %v137 = vunpack.c.l.b16 %v105
  %v138 = vunpack.c.l.b16 %v106
  %v139 = vunpack.c.l.b16 %v107
  %v140 = vunpack.c.l.b16 %v108
  %v141 = vunpack.c.l.b16 %v109
  %v142 = vunpack.c.l.b16 %v110
  %v143 = vunpack.c.l.b16 %v111
  %v144 = vunpack.c.l.b16 %v112
  %v145 = vunpack.c.l.b16 %v113
  %v146 = vunpack.c.l.b16 %v114
  %v147 = vpack.c.b16 %v132, %v131
  %v148 = vpack.c.b16 %v134, %v133
  %v149 = vpack.c.b16 %v136, %v135
  %v150 = vpack.c.b16 %v138, %v137
  %v151 = vpack.c.b16 %v140, %v139
  %v152 = vpack.c.b16 %v142, %v141
  %v153 = vpack.c.b16 %v144, %v143
  %v154 = vpack.c.b16 %v146, %v145
  %163 = vmatprep.subr.bf16.mxu0 0
  %164 = vmatpush1.bf16.msra.mxu0 %v147
  %165 = vmatprep.subr.bf16.mxu0 0
  %166 = vmatpush1.bf16.msra.mxu0 %v148
  %167 = vmatprep.subr.bf16.mxu0 0
  %168 = vmatpush1.bf16.msra.mxu0 %v149
  %169 = vmatprep.subr.bf16.mxu0 0
  %170 = vmatpush1.bf16.msra.mxu0 %v150
  %171 = vmatprep.subr.bf16.mxu0 0
  %172 = vmatpush1.bf16.msra.mxu0 %v151
  %173 = vmatprep.subr.bf16.mxu0 0
  %174 = vmatpush1.bf16.msra.mxu0 %v152
  %175 = vmatprep.subr.bf16.mxu0 0
  %176 = vmatpush1.bf16.msra.mxu0 %v153
  %177 = vmatprep.subr.bf16.mxu0 0
  %178 = vmatpush1.bf16.msra.mxu0 %v154
  %179 = vmatprep.subr.bf16.mxu0 0
  %180 = vmatpush1.bf16.msra.mxu0 0
  %181 = vmatprep.subr.bf16.mxu0 0
  %182 = vmatpush1.bf16.msra.mxu0 0
  %183 = vmatprep.subr.bf16.mxu0 0
  %184 = vmatpush1.bf16.msra.mxu0 0
  %185 = vmatprep.subr.bf16.mxu0 0
  %186 = vmatpush1.bf16.msra.mxu0 0
  %187 = vmatprep.subr.bf16.mxu0 0
  %188 = vmatpush1.bf16.msra.mxu0 0
  %189 = vmatprep.subr.bf16.mxu0 0
  %190 = vmatpush1.bf16.msra.mxu0 0
  %191 = vmatprep.subr.bf16.mxu0 0
  %192 = vmatpush1.bf16.msra.mxu0 0
  %193 = vmatprep.subr.bf16.mxu0 0
  %194 = vmatpush1.bf16.msra.mxu0 0
  %195 = vmatprep.mubr.bf16.mxu0 0
  %196 = vmatmul.mubr.bf16.gmra.mrb[0].mxu0 %v98
  %v197 = vpop.f32.mrb[0].mxu0
  %v198 = vadd.f32 0.0, %v197
  %v199 = vpop.f32.mrb[0].mxu0
  %v200 = vpop.f32.mrb[0].mxu0
  %v201 = vadd.f32 0.0, %v200
  %v202 = vpop.f32.mrb[0].mxu0
  %203 = vdwg.mxu0
  %v204 = vpack.c.bf16 %v95, %v92
  %v205 = vld [vmem:[%s4] sm:$0xf]
  %v206 = vld [vmem:[%s4 + $0x4] sm:$0xf]
  %v207 = vld [vmem:[%s4 + $0x8] sm:$0xf]
  %v208 = vld [vmem:[%s4 + $0xc] sm:$0xf]
  %v209 = vld [vmem:[%s4 + $0x10] sm:$0xf]
  %v210 = vld [vmem:[%s4 + $0x14] sm:$0xf]
  %v211 = vld [vmem:[%s4 + $0x18] sm:$0xf]
  %v212 = vld [vmem:[%s4 + $0x1c] sm:$0xf]
  %v213 = vld [vmem:[%s4 + $0x20] sm:$0xf]
  %v214 = vld [vmem:[%s4 + $0x24] sm:$0xf]
  %v215 = vld [vmem:[%s4 + $0x28] sm:$0xf]
  %v216 = vld [vmem:[%s4 + $0x2c] sm:$0xf]
  %v217 = vld [vmem:[%s4 + $0x30] sm:$0xf]
  %v218 = vld [vmem:[%s4 + $0x34] sm:$0xf]
  %v219 = vld [vmem:[%s4 + $0x38] sm:$0xf]
  %v220 = vld [vmem:[%s4 + $0x3c] sm:$0xf]
  %v237 = vunpack.c.l.b16 %v205
  %v238 = vunpack.c.l.b16 %v206
  %v239 = vunpack.c.l.b16 %v207
  %v240 = vunpack.c.l.b16 %v208
  %v241 = vunpack.c.l.b16 %v209
  %v242 = vunpack.c.l.b16 %v210
  %v243 = vunpack.c.l.b16 %v211
  %v244 = vunpack.c.l.b16 %v212
  %v245 = vunpack.c.l.b16 %v213
  %v246 = vunpack.c.l.b16 %v214
  %v247 = vunpack.c.l.b16 %v215
  %v248 = vunpack.c.l.b16 %v216
  %v249 = vunpack.c.l.b16 %v217
  %v250 = vunpack.c.l.b16 %v218
  %v251 = vunpack.c.l.b16 %v219
  %v252 = vunpack.c.l.b16 %v220
  %v253 = vpack.c.b16 %v238, %v237
  %v254 = vpack.c.b16 %v240, %v239
  %v255 = vpack.c.b16 %v242, %v241
  %v256 = vpack.c.b16 %v244, %v243
  %v257 = vpack.c.b16 %v246, %v245
  %v258 = vpack.c.b16 %v248, %v247
  %v259 = vpack.c.b16 %v250, %v249
  %v260 = vpack.c.b16 %v252, %v251
  %269 = vmatprep.subr.bf16.mxu0 0
  %270 = vmatpush1.bf16.msra.mxu0 %v253
  %271 = vmatprep.subr.bf16.mxu0 0
  %272 = vmatpush1.bf16.msra.mxu0 %v254
  %273 = vmatprep.subr.bf16.mxu0 0
  %274 = vmatpush1.bf16.msra.mxu0 %v255
  %275 = vmatprep.subr.bf16.mxu0 0
  %276 = vmatpush1.bf16.msra.mxu0 %v256
  %277 = vmatprep.subr.bf16.mxu0 0
  %278 = vmatpush1.bf16.msra.mxu0 %v257
  %279 = vmatprep.subr.bf16.mxu0 0
  %280 = vmatpush1.bf16.msra.mxu0 %v258
  %281 = vmatprep.subr.bf16.mxu0 0
  %282 = vmatpush1.bf16.msra.mxu0 %v259
  %283 = vmatprep.subr.bf16.mxu0 0
  %284 = vmatpush1.bf16.msra.mxu0 %v260
  %285 = vmatprep.subr.bf16.mxu0 0
  %286 = vmatpush1.bf16.msra.mxu0 0
  %287 = vmatprep.subr.bf16.mxu0 0
  %288 = vmatpush1.bf16.msra.mxu0 0
  %289 = vmatprep.subr.bf16.mxu0 0
  %290 = vmatpush1.bf16.msra.mxu0 0
  %291 = vmatprep.subr.bf16.mxu0 0
  %292 = vmatpush1.bf16.msra.mxu0 0
  %293 = vmatprep.subr.bf16.mxu0 0
  %294 = vmatpush1.bf16.msra.mxu0 0
  %295 = vmatprep.subr.bf16.mxu0 0
  %296 = vmatpush1.bf16.msra.mxu0 0
  %297 = vmatprep.subr.bf16.mxu0 0
  %298 = vmatpush1.bf16.msra.mxu0 0
  %299 = vmatprep.subr.bf16.mxu0 0
  %300 = vmatpush1.bf16.msra.mxu0 0
  %301 = vmatprep.mubr.bf16.mxu0 0
  %302 = vmatmul.mubr.bf16.gmra.mrb[0].mxu0 %v204
  %v303 = vpop.f32.mrb[0].mxu0
  %v304 = vadd.f32 0.0, %v303
  %v305 = vpop.f32.mrb[0].mxu0
  %v306 = vpop.f32.mrb[0].mxu0
  %v307 = vadd.f32 0.0, %v306
  %v308 = vpop.f32.mrb[0].mxu0
  %309 = vdwg.mxu0
  %v310 = vand.u32 2147483647, %v198
  %v311 = vand.u32 2147483647, %v201
  %v312 = vand.u32 2147483647, %v304
  %v313 = vand.u32 2147483647, %v307
  %v314 = vadd.f32 %v310, %v312
  %v315 = vadd.f32 %v311, %v313
  %v316 = vadd.f32 %v314, %v315
  %v317 = vrot.slane %v316, 4
  %v318 = vadd.f32 %v316, %v317
  %v319 = vrot.slane %v318, 2
  %v320 = vadd.f32 %v318, %v319
  %v321 = vrot.slane %v320, 1
  %v322 = vadd.f32 %v320, %v321
  %323 = vst [vmem:[%s5] sm:$0x1] %v322
  // Predicated region
  $region22: #{gradient_loss.1} parent=0 // pred_check
    _
  $region23: #{gradient_loss.1} parent=0 // pred_check_branch
    %325 = sbr.rel (0) target = $region25
  $region24: #{gradient_loss.1} parent=0 // pred_region
    _
  $region25: #{gradient_loss.1} parent=0 // pred_fallthru
    _
  // Predicated region
  $region26: #{gradient_loss.1} parent=0 // pred_check
    _
  $region27: #{gradient_loss.1} parent=0 // pred_check_branch
    %327 = sbr.rel (0) target = $region29
  $region28: #{gradient_loss.1} parent=0 // pred_region
    _
  $region29: #{gradient_loss.1} parent=0 // pred_fallthru
    _

</llo_original>
